<compile_context>
chip_gen: v5e
topology: v5e:2x2
jax: 0.10.0
libtpu: 0.0.40
codegen_flags: <defaults>
</compile_context>

<pallas_src>
import jax
import jax.numpy as jnp
from jax.experimental import pallas as pl
from jax.experimental.pallas import tpu as pltpu

LANE = 128  # TPU lane width; also the MLP hidden width (hid=128)


def _round_up(n, m):
    return (n + m - 1) // m * m


def _orthogonal(key, rows, cols, gain=1.0, dtype=jnp.float32):
    """Deterministic orthogonal init matching torch.nn.init.orthogonal_ semantics
    (for a weight of shape (rows, cols))."""
    transpose = rows < cols
    a = jax.random.normal(key, (max(rows, cols), min(rows, cols)), dtype)
    q, r = jnp.linalg.qr(a)
    d = jnp.sign(jnp.diagonal(r))
    q = q * d[None, :]
    if transpose:
        q = q.T
    return (gain * q[:rows, :cols]).astype(dtype)


def _mlp_kernel(x_ref, w_ref, b_ref, o_ref):
    """Fused 3-layer MLP on one (TB, 128) batch tile.

    x_ref: (TB, 128)    f32  -- input rows, feature axis zero-padded to 128
    w_ref: (3, 128, 128) bf16 -- packed [w1; w2; w3], each stored [in, out]
    b_ref: (3, 128)     f32  -- packed biases (zero-padded)
    o_ref: (TB, 128)    f32  -- lane-dense padded output
    """
    x = x_ref[...].astype(jnp.bfloat16)                       # bf16 MXU operands
    h1 = jnp.dot(x, w_ref[0], preferred_element_type=jnp.float32) + b_ref[0:1, :]
    h1 = jnp.maximum(h1, 0.0).astype(jnp.bfloat16)            # f32 bias/ReLU, bf16 for MXU
    h2 = jnp.dot(h1, w_ref[1], preferred_element_type=jnp.float32) + b_ref[1:2, :]
    h2 = jnp.maximum(h2, 0.0).astype(jnp.bfloat16)
    o_ref[...] = (jnp.dot(h2, w_ref[2], preferred_element_type=jnp.float32)
                  + b_ref[2:3, :]).astype(o_ref.dtype)


def predictor_network_forward(x, params):
    """x: [B, in_dim] float32. Returns [B, out_dim] float32."""
    in_dim = params["in_dim"]
    out_dim = params["out_dim"]
    w_pack = params["w_pack"]
    b_pack = params["b_pack"]

    B = x.shape[0]
    # Batch tiling: TB=256 matches the 256-wide MXU on v6e/v7x (~1.5 MiB VMEM per
    # call including double-buffered x/out -> comfortably within v7x's 64 MiB).
    B8 = _round_up(max(B, 1), 8)
    TB = min(256, B8)
    B_pad = _round_up(B8, TB)
    grid_b = B_pad // TB

    # Zero-pad rows to B_pad and features to 128 (w1's padded rows are zero too,
    # so the matmul result is unchanged) -> unmasked, lane-dense loads.
    x_pad = jnp.zeros((B_pad, LANE), jnp.float32).at[:B, :in_dim].set(
        x.astype(jnp.float32))

    flops = 2 * B_pad * 3 * LANE * LANE
    bytes_accessed = (x_pad.size * 4 + w_pack.size * 2 + b_pack.size * 4
                      + B_pad * LANE * 4)

    out_pad = pl.pallas_call(
        _mlp_kernel,
        out_shape=jax.ShapeDtypeStruct((B_pad, LANE), jnp.float32),
        grid=(grid_b,),
        in_specs=[
            pl.BlockSpec((TB, LANE), lambda i: (i, 0)),          # streamed x tiles
            pl.BlockSpec((3, LANE, LANE), lambda i: (0, 0, 0)),  # VMEM-resident weights
            pl.BlockSpec((3, LANE), lambda i: (0, 0)),           # VMEM-resident biases
        ],
        out_specs=pl.BlockSpec((TB, LANE), lambda i: (i, 0)),    # lane-dense output
        compiler_params=pltpu.CompilerParams(
            dimension_semantics=("parallel",)),                  # v7x: shard across 2 TCs
        cost_estimate=pl.CostEstimate(
            flops=flops, transcendentals=0, bytes_accessed=bytes_accessed),
    )(x_pad, w_pack, b_pack)

    return out_pad[:B, :out_dim]


def make_params(in_dim, out_dim, hid=128, seed=1):
    """Deterministic init mirroring PredictorNetwork.__init__:
    orthogonal weights (gain=1.0), zero biases. Weights are packed + padded."""
    assert hid == LANE and in_dim <= LANE and out_dim <= LANE, (
        "packed-weight fast path assumes hid == 128 and in/out dims <= 128")
    # TODO(synk): generalize packing/tiling for hid != 128 or in/out dims > 128.
    k1, k2, k3 = jax.random.split(jax.random.PRNGKey(seed), 3)
    w1_pt = _orthogonal(k1, hid, in_dim)       # nn.Linear layout (out, in)
    w2_pt = _orthogonal(k2, hid, hid)
    w3_pt = _orthogonal(k3, out_dim, hid)

    # Store transposed ([in, out]) and zero-pad each to (128, 128).
    w1 = jnp.zeros((LANE, LANE), jnp.float32).at[:in_dim, :hid].set(w1_pt.T)
    w2 = w2_pt.T.astype(jnp.float32)
    w3 = jnp.zeros((LANE, LANE), jnp.float32).at[:hid, :out_dim].set(w3_pt.T)

    return dict(
        w_pack=jnp.stack([w1, w2, w3]).astype(jnp.bfloat16),  # one ~96 KB DMA
        b_pack=jnp.zeros((3, LANE), jnp.float32),             # zero-init biases
        w_f32=(w1_pt.T, w2_pt.T, w3_pt.T),                    # reference-only copies
        in_dim=in_dim, out_dim=out_dim, hid=hid,
    )


def reference_forward_bf16(x, params):
    """Pure-jnp reference mirroring the kernel's bf16-operand / f32-accumulate path."""
    in_dim, out_dim = params["in_dim"], params["out_dim"]
    wp, bp = params["w_pack"], params["b_pack"]
    B = x.shape[0]
    xp = jnp.zeros((B, LANE), jnp.float32).at[:, :in_dim].set(x).astype(jnp.bfloat16)
    h1 = jnp.maximum(jnp.dot(xp, wp[0], preferred_element_type=jnp.float32) + bp[0], 0.0)
    h2 = jnp.maximum(jnp.dot(h1.astype(jnp.bfloat16), wp[1],
                             preferred_element_type=jnp.float32) + bp[1], 0.0)
    y = jnp.dot(h2.astype(jnp.bfloat16), wp[2],
                preferred_element_type=jnp.float32) + bp[2]
    return y[:, :out_dim]


def reference_forward_f32(x, params):
    """Full-precision reference (original PyTorch math, zero biases)."""
    w1, w2, w3 = params["w_f32"]
    h1 = jnp.maximum(x @ w1, 0.0)
    h2 = jnp.maximum(h1 @ w2, 0.0)
    return h2 @ w3


if __name__ == "__main__":
    B, in_dim, hid, out_dim = 8, 32, 128, 16
    key = jax.random.PRNGKey(0)
    x = jax.random.normal(key, (B, in_dim), jnp.float32)
    params = make_params(in_dim, out_dim, hid)

    out = jax.block_until_ready(predictor_network_forward(x, params))
    assert out.shape == (B, out_dim)

    ref = reference_forward_bf16(x, params)
    assert jnp.allclose(out, ref, atol=1e-3, rtol=1e-3), float(
        jnp.max(jnp.abs(out - ref)))

    ref32 = reference_forward_f32(x, params)  # loose check vs full-f32 math (bf16 weights)
    assert jnp.allclose(out, ref32, atol=5e-2, rtol=5e-2), float(
        jnp.max(jnp.abs(out - ref32)))

    print("KERNEL_OK")
</pallas_src>

<mosaic_0001>
module attributes {stable_mosaic.version = 11 : i64} {
  func.func @_mlp_kernel(%arg0: i32, %arg1: memref<8x128xf32, #tpu.memory_space<vmem>>, %arg2: memref<3x128x128xbf16, #tpu.memory_space<vmem>>, %arg3: memref<3x128xf32, #tpu.memory_space<vmem>>, %arg4: memref<8x128xf32, #tpu.memory_space<vmem>>) attributes {dimension_semantics = [#tpu.dimension_semantics<parallel>], iteration_bounds = array<i64: 1>, scalar_prefetch = 0 : i64, scratch_operands = 0 : i64, tpu.core_type = #tpu.core_type<tc>, window_params = [{transform_indices = @transform_0, window_bounds = array<i64: 8, 128>}, {pipeline_mode = #tpu.pipeline_mode<synchronous>, transform_indices = @transform_1, window_bounds = array<i64: 3, 128, 128>}, {pipeline_mode = #tpu.pipeline_mode<synchronous>, transform_indices = @transform_2, window_bounds = array<i64: 3, 128>}, {transform_indices = @transform_3, window_bounds = array<i64: 8, 128>}]} {
    %c0 = arith.constant 0 : index
    %c0_0 = arith.constant 0 : index
    %0 = vector.load %arg1[%c0, %c0_0] : memref<8x128xf32, #tpu.memory_space<vmem>>, vector<8x128xf32>
    %1 = arith.truncf %0 : vector<8x128xf32> to vector<8x128xbf16>
    %c0_1 = arith.constant 0 : index
    %c0_2 = arith.constant 0 : index
    %c0_3 = arith.constant 0 : index
    %2 = vector.load %arg2[%c0_1, %c0_2, %c0_3] : memref<3x128x128xbf16, #tpu.memory_space<vmem>>, vector<1x128x128xbf16>
    %3 = vector.shape_cast %2 : vector<1x128x128xbf16> to vector<128x128xbf16>
    %cst = arith.constant dense<0.000000e+00> : vector<8x128xf32>
    %4 = tpu.matmul %1, %3, %cst {dimension_numbers = #tpu.dot_dimension_numbers<[1], [0], [0], [1], [0, 0, 1, 1], [], []>} : vector<8x128xbf16>, vector<128x128xbf16>, vector<8x128xf32> -> vector<8x128xf32>
    %c0_4 = arith.constant 0 : index
    %c0_5 = arith.constant 0 : index
    %5 = vector.load %arg3[%c0_4, %c0_5] : memref<3x128xf32, #tpu.memory_space<vmem>>, vector<1x128xf32>
    %6 = vector.broadcast %5 : vector<1x128xf32> to vector<8x128xf32>
    %7 = arith.addf %4, %6 : vector<8x128xf32>
    %cst_6 = arith.constant 0.000000e+00 : f32
    %8 = vector.broadcast %cst_6 : f32 to vector<8x128xf32>
    %9 = arith.maximumf %7, %8 : vector<8x128xf32>
    %10 = arith.truncf %9 : vector<8x128xf32> to vector<8x128xbf16>
    %c1 = arith.constant 1 : index
    %c0_7 = arith.constant 0 : index
    %c0_8 = arith.constant 0 : index
    %11 = vector.load %arg2[%c1, %c0_7, %c0_8] : memref<3x128x128xbf16, #tpu.memory_space<vmem>>, vector<1x128x128xbf16>
    %12 = vector.shape_cast %11 : vector<1x128x128xbf16> to vector<128x128xbf16>
    %cst_9 = arith.constant dense<0.000000e+00> : vector<8x128xf32>
    %13 = tpu.matmul %10, %12, %cst_9 {dimension_numbers = #tpu.dot_dimension_numbers<[1], [0], [0], [1], [0, 0, 1, 1], [], []>} : vector<8x128xbf16>, vector<128x128xbf16>, vector<8x128xf32> -> vector<8x128xf32>
    %c1_10 = arith.constant 1 : index
    %c0_11 = arith.constant 0 : index
    %14 = vector.load %arg3[%c1_10, %c0_11] : memref<3x128xf32, #tpu.memory_space<vmem>>, vector<1x128xf32>
    %15 = vector.broadcast %14 : vector<1x128xf32> to vector<8x128xf32>
    %16 = arith.addf %13, %15 : vector<8x128xf32>
    %cst_12 = arith.constant 0.000000e+00 : f32
    %17 = vector.broadcast %cst_12 : f32 to vector<8x128xf32>
    %18 = arith.maximumf %16, %17 : vector<8x128xf32>
    %19 = arith.truncf %18 : vector<8x128xf32> to vector<8x128xbf16>
    %c2 = arith.constant 2 : index
    %c0_13 = arith.constant 0 : index
    %c0_14 = arith.constant 0 : index
    %20 = vector.load %arg2[%c2, %c0_13, %c0_14] : memref<3x128x128xbf16, #tpu.memory_space<vmem>>, vector<1x128x128xbf16>
    %21 = vector.shape_cast %20 : vector<1x128x128xbf16> to vector<128x128xbf16>
    %cst_15 = arith.constant dense<0.000000e+00> : vector<8x128xf32>
    %22 = tpu.matmul %19, %21, %cst_15 {dimension_numbers = #tpu.dot_dimension_numbers<[1], [0], [0], [1], [0, 0, 1, 1], [], []>} : vector<8x128xbf16>, vector<128x128xbf16>, vector<8x128xf32> -> vector<8x128xf32>
    %c2_16 = arith.constant 2 : index
    %c0_17 = arith.constant 0 : index
    %23 = vector.load %arg3[%c2_16, %c0_17] : memref<3x128xf32, #tpu.memory_space<vmem>>, vector<1x128xf32>
    %24 = vector.broadcast %23 : vector<1x128xf32> to vector<8x128xf32>
    %25 = arith.addf %22, %24 : vector<8x128xf32>
    %c0_18 = arith.constant 0 : index
    %c0_19 = arith.constant 0 : index
    %26 = vector.load %arg4[%c0_18, %c0_19] : memref<8x128xf32, #tpu.memory_space<vmem>>, vector<8x128xf32>
    tpu.vector_store %arg4[%c0_18, %c0_19], %25 {strides = array<i32>} : memref<8x128xf32, #tpu.memory_space<vmem>>, vector<8x128xf32>,
    return
  }
  func.func @transform_0(%arg0: i32) -> (i32, i32) {
    %c0_i32 = arith.constant 0 : i32
    %c0_i32_0 = arith.constant 0 : i32
    return %arg0, %c0_i32 : i32, i32
  }
  func.func @transform_1(%arg0: i32) -> (i32, i32, i32) {
    %c0_i32 = arith.constant 0 : i32
    %c0_i32_0 = arith.constant 0 : i32
    %c0_i32_1 = arith.constant 0 : i32
    %c0_i32_2 = arith.constant 0 : i32
    return %c0_i32, %c0_i32_0, %c0_i32_1 : i32, i32, i32
  }
  func.func @transform_2(%arg0: i32) -> (i32, i32) {
    %c0_i32 = arith.constant 0 : i32
    %c0_i32_0 = arith.constant 0 : i32
    %c0_i32_1 = arith.constant 0 : i32
    return %c0_i32, %c0_i32_0 : i32, i32
  }
  func.func @transform_3(%arg0: i32) -> (i32, i32) {
    %c0_i32 = arith.constant 0 : i32
    %c0_i32_0 = arith.constant 0 : i32
    return %arg0, %c0_i32 : i32, i32
  }
}

</mosaic_0001>

<llo_original>
// kernel: tpu_custom_call.1
$region0: #{tpu_custom_call.1}
  #allocation0 [shape = 'u32[]', space=smem, size = 0x4, offset = 0x4, fixed_abs, tag = 'smem constant byte address 0x4 - core index']
  #allocation1 [shape = 'u32[72,128]{1,0:T(1,128)}', space=vmem, size = 0x9000, scoped, tag = 'internal scratch']
  %s0 = inlined_call_operand.hbm [shape: f32[8,128], index: 0, kind: input, shape index: {}]
  %s1 = inlined_call_operand.hbm [shape: bf16[3,128,128], index: 1, kind: input, shape index: {}]
  %s2 = inlined_call_operand.hbm [shape: f32[3,128], index: 2, kind: input, shape index: {}]
  %s3 = inlined_call_operand.hbm [shape: f32[8,128], index: 3, kind: output, shape index: {}]
  %s4 = sld [smem:[#allocation0]]
  $region34: #{tpu_custom_call.1} parent=0
    _
  %s6 = ssub.s32 1, %s4
  %s7 = scalar_select 0, %s6, %s4
  $region1: #{tpu_custom_call.1} parent=0
    #allocation2 [shape = 'u8[4096]{0}', space=vmem, size = 0x1000, scoped, tag = 'input window, operand 0, single buffered']
    #allocation3 [shape = 's32[1]{0}', space=sflag, size = 0x4, scoped, tag = 'scoped memory for tpu_custom_call.1']
    #allocation4 [shape = 's32[1]{0}', space=sflag, size = 0x4, scoped, tag = 'scoped memory for tpu_custom_call.1']
    #allocation5 [shape = 'u8[98304]{0}', space=vmem, size = 0x18000, scoped, tag = 'input window, operand 1, single buffered']
    #allocation6 [shape = 's32[1]{0}', space=sflag, size = 0x4, scoped, tag = 'scoped memory for tpu_custom_call.1']
    #allocation7 [shape = 'u8[2048]{0}', space=vmem, size = 0x800, scoped, tag = 'input window, operand 2, single buffered']
    #allocation8 [shape = 'u8[4096]{0}', space=vmem, size = 0x1000, scoped, tag = 'output window, operand 0, single buffered']
    %8 = vsyncpa [#allocation3], 0
    %9 = vsyncpa [#allocation6], 0
    %10 = vsyncpa [#allocation4], 0
    // Predicated region
    $region2: #{tpu_custom_call.1} parent=1 // pred_check
      _
    $region3: #{tpu_custom_call.1} parent=1 // pred_check_branch
      %12 = sbr.rel (0) target = $region5
    $region4: #{tpu_custom_call.1} parent=1 // pred_region
      %14 = vsyncadd [#allocation3], 0
      %s16 = sshll.u32 %s0, 4
      %s17 = int_to_ptr.hbm [resolvable:$true] %s16
      %s18 = sshll.u32 [#allocation2], 4
      %s19 = int_to_ptr.vmem [resolvable:$true] %s18
      %21 = dma.hbm_to_vmem [thread:$0]  %s17, 128, %s19, [#allocation3]
    $region5: #{tpu_custom_call.1} parent=1 // pred_fallthru
      _
    // Predicated region
    $region6: #{tpu_custom_call.1} parent=1 // pred_check
      _
    $region7: #{tpu_custom_call.1} parent=1 // pred_check_branch
      %23 = sbr.rel (0) target = $region9
    $region8: #{tpu_custom_call.1} parent=1 // pred_region
      %25 = vsyncadd [#allocation6], 0
      %s26 = sshll.u32 %s1, 4
      %s27 = int_to_ptr.hbm [resolvable:$true] %s26
      %s28 = sshll.u32 [#allocation5], 4
      %s29 = int_to_ptr.vmem [resolvable:$true] %s28
      %34 = dma.hbm_to_vmem [thread:$0]  %s27, 3072, %s29, [#allocation6], 64, 64, 4
    $region9: #{tpu_custom_call.1} parent=1 // pred_fallthru
      _
    // Predicated region
    $region10: #{tpu_custom_call.1} parent=1 // pred_check
      _
    $region11: #{tpu_custom_call.1} parent=1 // pred_check_branch
      %36 = sbr.rel (0) target = $region13
    $region12: #{tpu_custom_call.1} parent=1 // pred_region
      %38 = vsyncadd [#allocation6], 0
      %s40 = sshll.u32 %s2, 4
      %s41 = int_to_ptr.hbm [resolvable:$true] %s40
      %s42 = sshll.u32 [#allocation7], 4
      %s43 = int_to_ptr.vmem [resolvable:$true] %s42
      %45 = dma.hbm_to_vmem [thread:$0]  %s41, 64, %s43, [#allocation6]
    $region13: #{tpu_custom_call.1} parent=1 // pred_fallthru
      _
    // Predicated region
    $region14: #{tpu_custom_call.1} parent=1 // pred_check
      _
    $region15: #{tpu_custom_call.1} parent=1 // pred_check_branch
      %47 = sbr.rel (0) target = $region17
    $region16: #{tpu_custom_call.1} parent=1 // pred_region
      %49 = dma.done [#allocation3], 128
    $region17: #{tpu_custom_call.1} parent=1 // pred_fallthru
      _
    // Predicated region
    $region18: #{tpu_custom_call.1} parent=1 // pred_check
      _
    $region19: #{tpu_custom_call.1} parent=1 // pred_check_branch
      %51 = sbr.rel (0) target = $region21
    $region20: #{tpu_custom_call.1} parent=1 // pred_region
      %53 = dma.done [#allocation6], 3072
    $region21: #{tpu_custom_call.1} parent=1 // pred_fallthru
      _
    // Predicated region
    $region22: #{tpu_custom_call.1} parent=1 // pred_check
      _
    $region23: #{tpu_custom_call.1} parent=1 // pred_check_branch
      %55 = sbr.rel (0) target = $region25
    $region24: #{tpu_custom_call.1} parent=1 // pred_region
      %57 = dma.done [#allocation6], 64
    $region25: #{tpu_custom_call.1} parent=1 // pred_fallthru
      _
    %v58 = vld [vmem:[#allocation2] sm:$0xff]
    %v59 = vpack.c.bf16 %v58, %v58
    %v60 = vld [vmem:[#allocation5] sm:$0xf]
    %v61 = vld [vmem:[#allocation5 + $0x4] sm:$0xf]
    %v62 = vld [vmem:[#allocation5 + $0x8] sm:$0xf]
    %v63 = vld [vmem:[#allocation5 + $0xc] sm:$0xf]
    %v64 = vld [vmem:[#allocation5 + $0x10] sm:$0xf]
    %v65 = vld [vmem:[#allocation5 + $0x14] sm:$0xf]
    %v66 = vld [vmem:[#allocation5 + $0x18] sm:$0xf]
    %v67 = vld [vmem:[#allocation5 + $0x1c] sm:$0xf]
    %v68 = vld [vmem:[#allocation5 + $0x20] sm:$0xf]
    %v69 = vld [vmem:[#allocation5 + $0x24] sm:$0xf]
    %v70 = vld [vmem:[#allocation5 + $0x28] sm:$0xf]
    %v71 = vld [vmem:[#allocation5 + $0x2c] sm:$0xf]
    %v72 = vld [vmem:[#allocation5 + $0x30] sm:$0xf]
    %v73 = vld [vmem:[#allocation5 + $0x34] sm:$0xf]
    %v74 = vld [vmem:[#allocation5 + $0x38] sm:$0xf]
    %v75 = vld [vmem:[#allocation5 + $0x3c] sm:$0xf]
    %v76 = vld [vmem:[#allocation7] sm:$0x1]
    %v77 = vperm.slane %v76, 0
    %v94 = vunpack.c.l.b16 %v60
    %v95 = vunpack.c.l.b16 %v61
    %v96 = vunpack.c.l.b16 %v62
    %v97 = vunpack.c.l.b16 %v63
    %v98 = vunpack.c.l.b16 %v64
    %v99 = vunpack.c.l.b16 %v65
    %v100 = vunpack.c.l.b16 %v66
    %v101 = vunpack.c.l.b16 %v67
    %v102 = vunpack.c.l.b16 %v68
    %v103 = vunpack.c.l.b16 %v69
    %v104 = vunpack.c.l.b16 %v70
    %v105 = vunpack.c.l.b16 %v71
    %v106 = vunpack.c.l.b16 %v72
    %v107 = vunpack.c.l.b16 %v73
    %v108 = vunpack.c.l.b16 %v74
    %v109 = vunpack.c.l.b16 %v75
    %v110 = vpack.c.b16 %v95, %v94
    %v111 = vpack.c.b16 %v97, %v96
    %v112 = vpack.c.b16 %v99, %v98
    %v113 = vpack.c.b16 %v101, %v100
    %v114 = vpack.c.b16 %v103, %v102
    %v115 = vpack.c.b16 %v105, %v104
    %v116 = vpack.c.b16 %v107, %v106
    %v117 = vpack.c.b16 %v109, %v108
    %126 = vmatpush.bf16.msra.mxu0 %v117
    %127 = vmatpush.bf16.msra.mxu0 %v116
    %128 = vmatpush.bf16.msra.mxu0 %v115
    %129 = vmatpush.bf16.msra.mxu0 %v114
    %130 = vmatpush.bf16.msra.mxu0 %v113
    %131 = vmatpush.bf16.msra.mxu0 %v112
    %132 = vmatpush.bf16.msra.mxu0 %v111
    %133 = vmatpush.bf16.msra.mxu0 %v110
    %134 = vmatmul.bf16.gmra.mxu0 %v59
    %v135 = vpop.f32.mrf.mxu0
    %v136 = vadd.f32 %v77, %v135
    %v137 = vpop.f32.mrf.mxu0
    %138 = vdwg.mxu0
    %v139 = vmax.f32 %v136, 0.0
    %v140 = vpack.c.bf16 %v139, %v139
    %s141 = scalar_lea.vmem [#allocation5], 64
    %v142 = vld [vmem:[%s141] sm:$0xf]
    %v143 = vld [vmem:[%s141 + $0x4] sm:$0xf]
    %v144 = vld [vmem:[%s141 + $0x8] sm:$0xf]
    %v145 = vld [vmem:[%s141 + $0xc] sm:$0xf]
    %v146 = vld [vmem:[%s141 + $0x10] sm:$0xf]
    %v147 = vld [vmem:[%s141 + $0x14] sm:$0xf]
    %v148 = vld [vmem:[%s141 + $0x18] sm:$0xf]
    %v149 = vld [vmem:[%s141 + $0x1c] sm:$0xf]
    %v150 = vld [vmem:[%s141 + $0x20] sm:$0xf]
    %v151 = vld [vmem:[%s141 + $0x24] sm:$0xf]
    %v152 = vld [vmem:[%s141 + $0x28] sm:$0xf]
    %v153 = vld [vmem:[%s141 + $0x2c] sm:$0xf]
    %v154 = vld [vmem:[%s141 + $0x30] sm:$0xf]
    %v155 = vld [vmem:[%s141 + $0x34] sm:$0xf]
    %v156 = vld [vmem:[%s141 + $0x38] sm:$0xf]
    %v157 = vld [vmem:[%s141 + $0x3c] sm:$0xf]
    %v158 = vld [vmem:[#allocation7 + $0x1] sm:$0x1]
    %v159 = vperm.slane %v158, 0
    %v176 = vunpack.c.l.b16 %v142
    %v177 = vunpack.c.l.b16 %v143
    %v178 = vunpack.c.l.b16 %v144
    %v179 = vunpack.c.l.b16 %v145
    %v180 = vunpack.c.l.b16 %v146
    %v181 = vunpack.c.l.b16 %v147
    %v182 = vunpack.c.l.b16 %v148
    %v183 = vunpack.c.l.b16 %v149
    %v184 = vunpack.c.l.b16 %v150
    %v185 = vunpack.c.l.b16 %v151
    %v186 = vunpack.c.l.b16 %v152
    %v187 = vunpack.c.l.b16 %v153
    %v188 = vunpack.c.l.b16 %v154
    %v189 = vunpack.c.l.b16 %v155
    %v190 = vunpack.c.l.b16 %v156
    %v191 = vunpack.c.l.b16 %v157
    %v192 = vpack.c.b16 %v177, %v176
    %v193 = vpack.c.b16 %v179, %v178
    %v194 = vpack.c.b16 %v181, %v180
    %v195 = vpack.c.b16 %v183, %v182
    %v196 = vpack.c.b16 %v185, %v184
    %v197 = vpack.c.b16 %v187, %v186
    %v198 = vpack.c.b16 %v189, %v188
    %v199 = vpack.c.b16 %v191, %v190
    %208 = vmatpush.bf16.msra.mxu0 %v199
    %209 = vmatpush.bf16.msra.mxu0 %v198
    %210 = vmatpush.bf16.msra.mxu0 %v197
    %211 = vmatpush.bf16.msra.mxu0 %v196
    %212 = vmatpush.bf16.msra.mxu0 %v195
    %213 = vmatpush.bf16.msra.mxu0 %v194
    %214 = vmatpush.bf16.msra.mxu0 %v193
    %215 = vmatpush.bf16.msra.mxu0 %v192
    %216 = vmatmul.bf16.gmra.mxu0 %v140
    %v217 = vpop.f32.mrf.mxu0
    %v218 = vadd.f32 %v159, %v217
    %v219 = vpop.f32.mrf.mxu0
    %220 = vdwg.mxu0
    %v221 = vmax.f32 %v218, 0.0
    %v222 = vpack.c.bf16 %v221, %v221
    %s223 = scalar_lea.vmem [#allocation5], 128
    %v224 = vld [vmem:[%s223] sm:$0xf]
    %v225 = vld [vmem:[%s223 + $0x4] sm:$0xf]
    %v226 = vld [vmem:[%s223 + $0x8] sm:$0xf]
    %v227 = vld [vmem:[%s223 + $0xc] sm:$0xf]
    %v228 = vld [vmem:[%s223 + $0x10] sm:$0xf]
    %v229 = vld [vmem:[%s223 + $0x14] sm:$0xf]
    %v230 = vld [vmem:[%s223 + $0x18] sm:$0xf]
    %v231 = vld [vmem:[%s223 + $0x1c] sm:$0xf]
    %v232 = vld [vmem:[%s223 + $0x20] sm:$0xf]
    %v233 = vld [vmem:[%s223 + $0x24] sm:$0xf]
    %v234 = vld [vmem:[%s223 + $0x28] sm:$0xf]
    %v235 = vld [vmem:[%s223 + $0x2c] sm:$0xf]
    %v236 = vld [vmem:[%s223 + $0x30] sm:$0xf]
    %v237 = vld [vmem:[%s223 + $0x34] sm:$0xf]
    %v238 = vld [vmem:[%s223 + $0x38] sm:$0xf]
    %v239 = vld [vmem:[%s223 + $0x3c] sm:$0xf]
    %v240 = vld [vmem:[#allocation7 + $0x2] sm:$0x1]
    %v241 = vperm.slane %v240, 0
    %v258 = vunpack.c.l.b16 %v224
    %v259 = vunpack.c.l.b16 %v225
    %v260 = vunpack.c.l.b16 %v226
    %v261 = vunpack.c.l.b16 %v227
    %v262 = vunpack.c.l.b16 %v228
    %v263 = vunpack.c.l.b16 %v229
    %v264 = vunpack.c.l.b16 %v230
    %v265 = vunpack.c.l.b16 %v231
    %v266 = vunpack.c.l.b16 %v232
    %v267 = vunpack.c.l.b16 %v233
    %v268 = vunpack.c.l.b16 %v234
    %v269 = vunpack.c.l.b16 %v235
    %v270 = vunpack.c.l.b16 %v236
    %v271 = vunpack.c.l.b16 %v237
    %v272 = vunpack.c.l.b16 %v238
    %v273 = vunpack.c.l.b16 %v239
    %v274 = vpack.c.b16 %v259, %v258
    %v275 = vpack.c.b16 %v261, %v260
    %v276 = vpack.c.b16 %v263, %v262
    %v277 = vpack.c.b16 %v265, %v264
    %v278 = vpack.c.b16 %v267, %v266
    %v279 = vpack.c.b16 %v269, %v268
    %v280 = vpack.c.b16 %v271, %v270
    %v281 = vpack.c.b16 %v273, %v272
    %290 = vmatpush.bf16.msra.mxu0 %v281
    %291 = vmatpush.bf16.msra.mxu0 %v280
    %292 = vmatpush.bf16.msra.mxu0 %v279
    %293 = vmatpush.bf16.msra.mxu0 %v278
    %294 = vmatpush.bf16.msra.mxu0 %v277
    %295 = vmatpush.bf16.msra.mxu0 %v276
    %296 = vmatpush.bf16.msra.mxu0 %v275
    %297 = vmatpush.bf16.msra.mxu0 %v274
    %298 = vmatmul.bf16.gmra.mxu0 %v222
    %v299 = vpop.f32.mrf.mxu0
    %v300 = vadd.f32 %v241, %v299
    %v301 = vpop.f32.mrf.mxu0
    %302 = vdwg.mxu0
    %303 = vst [vmem:[#allocation8] sm:$0xff] %v300
    // Predicated region
    $region26: #{tpu_custom_call.1} parent=1 // pred_check
      _
    $region27: #{tpu_custom_call.1} parent=1 // pred_check_branch
      %305 = sbr.rel (0) target = $region29
    $region28: #{tpu_custom_call.1} parent=1 // pred_region
      %307 = vsyncadd [#allocation4], 0
      %s309 = sshll.u32 [#allocation8], 4
      %s310 = int_to_ptr.vmem [resolvable:$true] %s309
      %s311 = sshll.u32 %s3, 4
      %s312 = int_to_ptr.hbm [resolvable:$true] %s311
      %314 = dma.vmem_to_hbm [thread:$0]  %s310, 128, %s312, [#allocation4]
    $region29: #{tpu_custom_call.1} parent=1 // pred_fallthru
      _
    // Predicated region
    $region30: #{tpu_custom_call.1} parent=1 // pred_check
      _
    $region31: #{tpu_custom_call.1} parent=1 // pred_check_branch
      %316 = sbr.rel (0) target = $region33
    $region32: #{tpu_custom_call.1} parent=1 // pred_region
      %318 = dma.done [#allocation4], 128
    $region33: #{tpu_custom_call.1} parent=1 // pred_fallthru
      _
    %319 = vsyncpa [#allocation3], 1
    %320 = vsyncpa [#allocation6], 1
    %321 = vsyncpa [#allocation4], 1

</llo_original>
